<compile_context>
chip_gen: v6e
topology: v6e:2x2x1
jax: 0.10.0
libtpu: 0.0.40
codegen_flags: <defaults>
</compile_context>

<pallas_src>
import functools

import jax
import jax.numpy as jnp
from jax.experimental import pallas as pl
from jax.experimental.pallas import tpu as pltpu

LOG_STD_MAX = 2.0
LOG_STD_MIN = -20.0


# ---------------------------------------------------------------------------
# Kernel 1: mu-net (runs once per forward call, grid=()).
# ---------------------------------------------------------------------------
def _mu_from_refs(obs_ref, w1_ref, b1_ref, w2_ref, b2_ref, w3_ref, b3_ref):
    x = obs_ref[...]                                                     # (B, D)
    h1 = jnp.tanh(
        jnp.dot(x, w1_ref[...], preferred_element_type=jnp.float32) + b1_ref[...])
    h2 = jnp.tanh(
        jnp.dot(h1, w2_ref[...], preferred_element_type=jnp.float32) + b2_ref[...])
    return jnp.dot(h2, w3_ref[...], preferred_element_type=jnp.float32) + b3_ref[...]


def _mu_kernel(obs_ref, w1_ref, b1_ref, w2_ref, b2_ref, w3_ref, b3_ref, mu_ref):
    mu_ref[...] = _mu_from_refs(obs_ref, w1_ref, b1_ref, w2_ref, b2_ref,
                                w3_ref, b3_ref)


def _mu_squash_kernel(obs_ref, w1_ref, b1_ref, w2_ref, b2_ref, w3_ref, b3_ref,
                      center_ref, half_ref, act_ref):
    mu = _mu_from_refs(obs_ref, w1_ref, b1_ref, w2_ref, b2_ref, w3_ref, b3_ref)
    act_ref[...] = center_ref[...] + half_ref[...] * jnp.tanh(mu)


# ---------------------------------------------------------------------------
# Kernel 2: noise + squash, lane-dense (n, B*A) rows, gridded over samples.
# ---------------------------------------------------------------------------
def _sample_squash_kernel(mu_ref, std_ref, center_ref, half_ref, eps_ref, act_ref):
    # mu/std/center/half: (1, B*A) resident rows; eps/act: (TILE, B*A) tiles.
    value = mu_ref[...] + std_ref[...] * eps_ref[...]
    act_ref[...] = center_ref[...] + half_ref[...] * jnp.tanh(value)


def _choose_tile_rows(n_rows, row_bytes, budget_bytes=4 << 20, max_rows=1024):
    """Largest sample-axis tile that keeps one eps/act buffer <= budget and is
    either a multiple of 8 or the full extent (TPU (8,128) block rule)."""
    if n_rows <= 8:
        return n_rows
    cap = max(8, budget_bytes // max(row_bytes, 1))
    cap = int(min(cap, n_rows, max_rows))
    if cap >= n_rows:
        return n_rows
    return max(8, (cap // 8) * 8)


def _full0(shape):
    # Full-array block for a grid=() pallas_call.
    return pl.BlockSpec(shape, lambda: (0,) * len(shape))


@functools.partial(jax.jit, static_argnames=("test", "tile_rows"))
def mlp_gaussian_actor_forward(obs, params, eps, *, test=False, tile_rows=None):
    """obs: (B, obs_dim) f32.  eps: (n, B, act_dim) f32 standard-normal draws.

    Returns action of shape (n, B, act_dim) (rsample path).  If test=True the
    noise is ignored (value = mu) and the action has shape (B, act_dim).
    """
    w1, b1, w2, b2, w3, b3, log_std, low, high = params
    B, D = obs.shape
    H1 = w1.shape[1]
    H2 = w2.shape[1]
    A = w3.shape[1]

    # TPU-friendly 2-D rows.
    b1_2d = b1.reshape(1, H1)
    b2_2d = b2.reshape(1, H2)
    b3_2d = b3.reshape(1, A)
    center = (0.5 * (low + high)).reshape(1, A).astype(jnp.float32)
    half = (0.5 * (high - low)).reshape(1, A).astype(jnp.float32)

    mu_specs = [
        _full0((B, D)),      # obs
        _full0((D, H1)),     # w1
        _full0((1, H1)),     # b1
        _full0((H1, H2)),    # w2
        _full0((1, H2)),     # b2
        _full0((H2, A)),     # w3
        _full0((1, A)),      # b3
    ]
    mu_args = (obs, w1, b1_2d, w2, b2_2d, w3, b3_2d)

    if test:
        # Deterministic path: action = squash(mu).  No eps traffic at all.
        return pl.pallas_call(
            _mu_squash_kernel,
            out_shape=jax.ShapeDtypeStruct((B, A), jnp.float32),
            grid=(),
            in_specs=mu_specs + [_full0((1, A)), _full0((1, A))],
            out_specs=_full0((B, A)),
            compiler_params=pltpu.CompilerParams(vmem_limit_bytes=32 << 20),
        )(*mu_args, center, half)

    # ---- stochastic path: rsample((n,)) ----
    n = eps.shape[0]
    BA = B * A

    mu = pl.pallas_call(
        _mu_kernel,
        out_shape=jax.ShapeDtypeStruct((B, A), jnp.float32),
        grid=(),
        in_specs=mu_specs,
        out_specs=_full0((B, A)),
        compiler_params=pltpu.CompilerParams(vmem_limit_bytes=32 << 20),
    )(*mu_args)

    # Lane-dense rows: flatten act-space vectors to a single (1, B*A) row,
    # repeating the per-action constants B times so index b*A + a matches.
    mu_row = mu.reshape(1, BA)
    std = jnp.exp(jnp.clip(log_std, LOG_STD_MIN, LOG_STD_MAX)).astype(jnp.float32)
    std_row = jnp.tile(std.reshape(1, A), (1, B))
    center_row = jnp.tile(center, (1, B))
    half_row = jnp.tile(half, (1, B))

    eps_rows = eps.reshape(n, BA).astype(jnp.float32)
    row_bytes = BA * 4
    tile = tile_rows if tile_rows is not None else _choose_tile_rows(n, row_bytes)
    n_pad = pl.cdiv(n, tile) * tile
    if n_pad != n:
        eps_rows = jnp.pad(eps_rows, ((0, n_pad - n), (0, 0)))

    act_rows = pl.pallas_call(
        _sample_squash_kernel,
        out_shape=jax.ShapeDtypeStruct((n_pad, BA), jnp.float32),
        grid=(n_pad // tile,),
        in_specs=[
            pl.BlockSpec((1, BA), lambda i: (0, 0)),       # mu_row   (resident)
            pl.BlockSpec((1, BA), lambda i: (0, 0)),       # std_row  (resident)
            pl.BlockSpec((1, BA), lambda i: (0, 0)),       # center   (resident)
            pl.BlockSpec((1, BA), lambda i: (0, 0)),       # half     (resident)
            pl.BlockSpec((tile, BA), lambda i: (i, 0)),    # eps tile (pipelined)
        ],
        out_specs=pl.BlockSpec((tile, BA), lambda i: (i, 0)),
        compiler_params=pltpu.CompilerParams(
            dimension_semantics=("parallel",),
            vmem_limit_bytes=32 << 20),
    )(mu_row, std_row, center_row, half_row, eps_rows)

    return act_rows[:n].reshape(n, B, A)


# ---------------------------------------------------------------------------
# Init + pure-JAX reference (for verification).
# ---------------------------------------------------------------------------
def init_params(key, obs_dim, hidden_sizes, act_dim, low, high):
    """Deterministic init mimicking torch.nn.Linear default (U[-1/sqrt(in), 1/sqrt(in)])."""
    sizes = [obs_dim] + list(hidden_sizes) + [act_dim]
    params = []
    for j in range(len(sizes) - 1):
        fan_in, fan_out = sizes[j], sizes[j + 1]
        key, kw, kb = jax.random.split(key, 3)
        bound = 1.0 / jnp.sqrt(fan_in)
        w = jax.random.uniform(kw, (fan_in, fan_out), jnp.float32, -bound, bound)
        b = jax.random.uniform(kb, (fan_out,), jnp.float32, -bound, bound)
        params += [w, b]
    log_std = -0.5 * jnp.ones((act_dim,), jnp.float32)
    params += [log_std,
               jnp.asarray(low, jnp.float32),
               jnp.asarray(high, jnp.float32)]
    return tuple(params)


def reference_forward(obs, params, eps, *, test=False):
    w1, b1, w2, b2, w3, b3, log_std, low, high = params
    h1 = jnp.tanh(obs @ w1 + b1)
    h2 = jnp.tanh(h1 @ w2 + b2)
    mu = h2 @ w3 + b3
    std = jnp.exp(jnp.clip(log_std, LOG_STD_MIN, LOG_STD_MAX))
    value = mu if test else mu[None] + std * eps
    return low + (high - low) * (jnp.tanh(value) + 1.0) / 2.0


if __name__ == "__main__":
    key = jax.random.PRNGKey(0)

    B = 8          # batch of observations
    OBS_DIM = 16
    HIDDEN = (32, 32)
    ACT_DIM = 4
    N_SAMPLES = 2  # dist.rsample((n,)) with n=2

    low = -2.0 * jnp.ones((ACT_DIM,), jnp.float32)
    high = 2.0 * jnp.ones((ACT_DIM,), jnp.float32)

    key, k_param, k_obs, k_eps = jax.random.split(key, 4)
    params = init_params(k_param, OBS_DIM, HIDDEN, ACT_DIM, low, high)
    obs = jax.random.normal(k_obs, (B, OBS_DIM), jnp.float32)
    eps = jax.random.normal(k_eps, (N_SAMPLES, B, ACT_DIM), jnp.float32)

    # rsample path (single-tile grid).
    action = jax.block_until_ready(
        mlp_gaussian_actor_forward(obs, params, eps, test=False))
    ref = reference_forward(obs, params, eps, test=False)
    assert action.shape == (N_SAMPLES, B, ACT_DIM), action.shape
    assert jnp.allclose(action, ref, atol=1e-5, rtol=1e-5), (
        float(jnp.max(jnp.abs(action - ref))))

    # test=True path (value = mu, no noise, shape (B, ACT_DIM)).
    action_test = jax.block_until_ready(
        mlp_gaussian_actor_forward(obs, params, eps, test=True))
    ref_test = reference_forward(obs, params, eps, test=True)
    assert action_test.shape == (B, ACT_DIM)
    assert jnp.allclose(action_test, ref_test, atol=1e-5, rtol=1e-5)

    # Multi-tile / padded grid path: n=20 samples with an 8-row tile -> grid=(3,).
    key, k_eps2 = jax.random.split(key)
    eps_big = jax.random.normal(k_eps2, (20, B, ACT_DIM), jnp.float32)
    action_big = jax.block_until_ready(
        mlp_gaussian_actor_forward(obs, params, eps_big, test=False, tile_rows=8))
    ref_big = reference_forward(obs, params, eps_big, test=False)
    assert action_big.shape == (20, B, ACT_DIM)
    assert jnp.allclose(action_big, ref_big, atol=1e-5, rtol=1e-5), (
        float(jnp.max(jnp.abs(action_big - ref_big))))

    print("KERNEL_OK")
</pallas_src>

<mosaic_0001>
module attributes {stable_mosaic.version = 11 : i64} {
  func.func @_mu_kernel(%arg0: memref<8x16xf32, #tpu.memory_space<vmem>>, %arg1: memref<16x32xf32, #tpu.memory_space<vmem>>, %arg2: memref<1x32xf32, #tpu.memory_space<vmem>>, %arg3: memref<32x32xf32, #tpu.memory_space<vmem>>, %arg4: memref<1x32xf32, #tpu.memory_space<vmem>>, %arg5: memref<32x4xf32, #tpu.memory_space<vmem>>, %arg6: memref<1x4xf32, #tpu.memory_space<vmem>>, %arg7: memref<8x4xf32, #tpu.memory_space<vmem>>) attributes {dimension_semantics = [], scalar_prefetch = 0 : i64, scratch_operands = 0 : i64, tpu.core_type = #tpu.core_type<tc>} {
    %c0 = arith.constant 0 : index
    %c0_0 = arith.constant 0 : index
    %0 = vector.load %arg0[%c0, %c0_0] : memref<8x16xf32, #tpu.memory_space<vmem>>, vector<8x16xf32>
    %c0_1 = arith.constant 0 : index
    %c0_2 = arith.constant 0 : index
    %1 = vector.load %arg1[%c0_1, %c0_2] : memref<16x32xf32, #tpu.memory_space<vmem>>, vector<16x32xf32>
    %cst = arith.constant dense<0.000000e+00> : vector<8x32xf32>
    %2 = tpu.matmul %0, %1, %cst {dimension_numbers = #tpu.dot_dimension_numbers<[1], [0], [0], [1], [0, 0, 1, 1], [], []>} : vector<8x16xf32>, vector<16x32xf32>, vector<8x32xf32> -> vector<8x32xf32>
    %c0_3 = arith.constant 0 : index
    %c0_4 = arith.constant 0 : index
    %3 = vector.load %arg2[%c0_3, %c0_4] : memref<1x32xf32, #tpu.memory_space<vmem>>, vector<1x32xf32>
    %4 = vector.broadcast %3 : vector<1x32xf32> to vector<8x32xf32>
    %5 = arith.addf %2, %4 : vector<8x32xf32>
    %6 = math.tanh %5 : vector<8x32xf32>
    %c0_5 = arith.constant 0 : index
    %c0_6 = arith.constant 0 : index
    %7 = vector.load %arg3[%c0_5, %c0_6] : memref<32x32xf32, #tpu.memory_space<vmem>>, vector<32x32xf32>
    %cst_7 = arith.constant dense<0.000000e+00> : vector<8x32xf32>
    %8 = tpu.matmul %6, %7, %cst_7 {dimension_numbers = #tpu.dot_dimension_numbers<[1], [0], [0], [1], [0, 0, 1, 1], [], []>} : vector<8x32xf32>, vector<32x32xf32>, vector<8x32xf32> -> vector<8x32xf32>
    %c0_8 = arith.constant 0 : index
    %c0_9 = arith.constant 0 : index
    %9 = vector.load %arg4[%c0_8, %c0_9] : memref<1x32xf32, #tpu.memory_space<vmem>>, vector<1x32xf32>
    %10 = vector.broadcast %9 : vector<1x32xf32> to vector<8x32xf32>
    %11 = arith.addf %8, %10 : vector<8x32xf32>
    %12 = math.tanh %11 : vector<8x32xf32>
    %c0_10 = arith.constant 0 : index
    %c0_11 = arith.constant 0 : index
    %13 = vector.load %arg5[%c0_10, %c0_11] : memref<32x4xf32, #tpu.memory_space<vmem>>, vector<32x4xf32>
    %cst_12 = arith.constant dense<0.000000e+00> : vector<8x4xf32>
    %14 = tpu.matmul %12, %13, %cst_12 {dimension_numbers = #tpu.dot_dimension_numbers<[1], [0], [0], [1], [0, 0, 1, 1], [], []>} : vector<8x32xf32>, vector<32x4xf32>, vector<8x4xf32> -> vector<8x4xf32>
    %c0_13 = arith.constant 0 : index
    %c0_14 = arith.constant 0 : index
    %15 = vector.load %arg6[%c0_13, %c0_14] : memref<1x4xf32, #tpu.memory_space<vmem>>, vector<1x4xf32>
    %16 = vector.broadcast %15 : vector<1x4xf32> to vector<8x4xf32>
    %17 = arith.addf %14, %16 : vector<8x4xf32>
    %c0_15 = arith.constant 0 : index
    %c0_16 = arith.constant 0 : index
    %18 = vector.load %arg7[%c0_15, %c0_16] : memref<8x4xf32, #tpu.memory_space<vmem>>, vector<8x4xf32>
    tpu.vector_store %arg7[%c0_15, %c0_16], %17 {strides = array<i32>} : memref<8x4xf32, #tpu.memory_space<vmem>>, vector<8x4xf32>,
    return
  }
}

module attributes {stable_mosaic.version = 11 : i64} {
  func.func @_sample_squash_kernel(%arg0: i32, %arg1: memref<1x32xf32, #tpu.memory_space<vmem>>, %arg2: memref<1x32xf32, #tpu.memory_space<vmem>>, %arg3: memref<1x32xf32, #tpu.memory_space<vmem>>, %arg4: memref<1x32xf32, #tpu.memory_space<vmem>>, %arg5: memref<2x32xf32, #tpu.memory_space<vmem>>, %arg6: memref<2x32xf32, #tpu.memory_space<vmem>>) attributes {dimension_semantics = [#tpu.dimension_semantics<parallel>], iteration_bounds = array<i64: 1>, scalar_prefetch = 0 : i64, scratch_operands = 0 : i64, tpu.core_type = #tpu.core_type<tc>, window_params = [{pipeline_mode = #tpu.pipeline_mode<synchronous>, transform_indices = @transform_0, window_bounds = array<i64: 1, 32>}, {pipeline_mode = #tpu.pipeline_mode<synchronous>, transform_indices = @transform_1, window_bounds = array<i64: 1, 32>}, {pipeline_mode = #tpu.pipeline_mode<synchronous>, transform_indices = @transform_2, window_bounds = array<i64: 1, 32>}, {pipeline_mode = #tpu.pipeline_mode<synchronous>, transform_indices = @transform_3, window_bounds = array<i64: 1, 32>}, {transform_indices = @transform_4, window_bounds = array<i64: 2, 32>}, {transform_indices = @transform_5, window_bounds = array<i64: 2, 32>}]} {
    %c0 = arith.constant 0 : index
    %c0_0 = arith.constant 0 : index
    %0 = vector.load %arg1[%c0, %c0_0] : memref<1x32xf32, #tpu.memory_space<vmem>>, vector<1x32xf32>
    %c0_1 = arith.constant 0 : index
    %c0_2 = arith.constant 0 : index
    %1 = vector.load %arg2[%c0_1, %c0_2] : memref<1x32xf32, #tpu.memory_space<vmem>>, vector<1x32xf32>
    %c0_3 = arith.constant 0 : index
    %c0_4 = arith.constant 0 : index
    %2 = vector.load %arg5[%c0_3, %c0_4] : memref<2x32xf32, #tpu.memory_space<vmem>>, vector<2x32xf32>
    %3 = vector.broadcast %1 : vector<1x32xf32> to vector<2x32xf32>
    %4 = arith.mulf %3, %2 : vector<2x32xf32>
    %5 = vector.broadcast %0 : vector<1x32xf32> to vector<2x32xf32>
    %6 = arith.addf %5, %4 : vector<2x32xf32>
    %c0_5 = arith.constant 0 : index
    %c0_6 = arith.constant 0 : index
    %7 = vector.load %arg3[%c0_5, %c0_6] : memref<1x32xf32, #tpu.memory_space<vmem>>, vector<1x32xf32>
    %c0_7 = arith.constant 0 : index
    %c0_8 = arith.constant 0 : index
    %8 = vector.load %arg4[%c0_7, %c0_8] : memref<1x32xf32, #tpu.memory_space<vmem>>, vector<1x32xf32>
    %9 = math.tanh %6 : vector<2x32xf32>
    %10 = vector.broadcast %8 : vector<1x32xf32> to vector<2x32xf32>
    %11 = arith.mulf %10, %9 : vector<2x32xf32>
    %12 = vector.broadcast %7 : vector<1x32xf32> to vector<2x32xf32>
    %13 = arith.addf %12, %11 : vector<2x32xf32>
    %c0_9 = arith.constant 0 : index
    %c0_10 = arith.constant 0 : index
    %14 = vector.load %arg6[%c0_9, %c0_10] : memref<2x32xf32, #tpu.memory_space<vmem>>, vector<2x32xf32>
    tpu.vector_store %arg6[%c0_9, %c0_10], %13 {strides = array<i32>} : memref<2x32xf32, #tpu.memory_space<vmem>>, vector<2x32xf32>,
    return
  }
  func.func @transform_0(%arg0: i32) -> (i32, i32) {
    %c0_i32 = arith.constant 0 : i32
    %c0_i32_0 = arith.constant 0 : i32
    %c0_i32_1 = arith.constant 0 : i32
    return %c0_i32, %c0_i32_0 : i32, i32
  }
  func.func @transform_1(%arg0: i32) -> (i32, i32) {
    %c0_i32 = arith.constant 0 : i32
    %c0_i32_0 = arith.constant 0 : i32
    %c0_i32_1 = arith.constant 0 : i32
    return %c0_i32, %c0_i32_0 : i32, i32
  }
  func.func @transform_2(%arg0: i32) -> (i32, i32) {
    %c0_i32 = arith.constant 0 : i32
    %c0_i32_0 = arith.constant 0 : i32
    %c0_i32_1 = arith.constant 0 : i32
    return %c0_i32, %c0_i32_0 : i32, i32
  }
  func.func @transform_3(%arg0: i32) -> (i32, i32) {
    %c0_i32 = arith.constant 0 : i32
    %c0_i32_0 = arith.constant 0 : i32
    %c0_i32_1 = arith.constant 0 : i32
    return %c0_i32, %c0_i32_0 : i32, i32
  }
  func.func @transform_4(%arg0: i32) -> (i32, i32) {
    %c0_i32 = arith.constant 0 : i32
    %c0_i32_0 = arith.constant 0 : i32
    return %arg0, %c0_i32 : i32, i32
  }
  func.func @transform_5(%arg0: i32) -> (i32, i32) {
    %c0_i32 = arith.constant 0 : i32
    %c0_i32_0 = arith.constant 0 : i32
    return %arg0, %c0_i32 : i32, i32
  }
}

</mosaic_0001>

<llo_original>
// kernel: mlp_gaussian_actor_forward.2
$region0: #{mlp_gaussian_actor_forward.2}
  #allocation0 [shape = 'u32[]', space=smem, size = 0x4, offset = 0x4, fixed_abs, tag = 'smem constant byte address 0x4 - core index']
  #allocation1 [shape = 'u32[144,128]{1,0:T(1,128)}', space=vmem, size = 0x12000, scoped, tag = 'internal scratch']
  %s0 = inlined_call_operand.vmem [shape: f32[8,16], index: 0, kind: input, shape index: {}]
  %s1 = inlined_call_operand.vmem [shape: f32[16,32], index: 1, kind: input, shape index: {}]
  %s2 = inlined_call_operand.hbm [shape: f32[1,32], index: 2, kind: input, shape index: {}]
  %s3 = inlined_call_operand.vmem [shape: f32[32,32], index: 3, kind: input, shape index: {}]
  %s4 = inlined_call_operand.hbm [shape: f32[1,32], index: 4, kind: input, shape index: {}]
  %s5 = inlined_call_operand.vmem [shape: f32[32,4], index: 5, kind: input, shape index: {}]
  %s6 = inlined_call_operand.hbm [shape: f32[1,4], index: 6, kind: input, shape index: {}]
  %s7 = inlined_call_operand.vmem [shape: f32[8,4], index: 7, kind: output, shape index: {}]
  %s8 = sld [smem:[#allocation0]]
  $region50: #{mlp_gaussian_actor_forward.2} parent=0
    _
  %s10 = ssub.s32 1, %s8
  %s11 = scalar_select 0, %s10, %s8
  $region1: #{mlp_gaussian_actor_forward.2} parent=0
    #allocation2 [shape = 'u8[512]{0}', space=vmem, size = 0x400, scoped, tag = 'input window, operand 2, single buffered']
    #allocation3 [shape = 's32[1]{0}', space=sflag, size = 0x4, scoped, tag = 'scoped memory for mlp_gaussian_actor_forward.2']
    #allocation4 [shape = 'u8[512]{0}', space=vmem, size = 0x400, scoped, tag = 'input window, operand 4, single buffered']
    #allocation5 [shape = 's32[1]{0}', space=sflag, size = 0x4, scoped, tag = 'scoped memory for mlp_gaussian_actor_forward.2']
    #allocation6 [shape = 'u8[512]{0}', space=vmem, size = 0x400, scoped, tag = 'input window, operand 6, single buffered']
    %12 = vsyncpa [#allocation3], 0
    %13 = vsyncpa [#allocation5], 0
    // Predicated region
    $region2: #{mlp_gaussian_actor_forward.2} parent=1 // pred_check
      _
    $region3: #{mlp_gaussian_actor_forward.2} parent=1 // pred_check_branch
      %15 = sbr.rel (0) target = $region5
    $region4: #{mlp_gaussian_actor_forward.2} parent=1 // pred_region
      _
    $region5: #{mlp_gaussian_actor_forward.2} parent=1 // pred_fallthru
      _
    // Predicated region
    $region6: #{mlp_gaussian_actor_forward.2} parent=1 // pred_check
      _
    $region7: #{mlp_gaussian_actor_forward.2} parent=1 // pred_check_branch
      %17 = sbr.rel (0) target = $region9
    $region8: #{mlp_gaussian_actor_forward.2} parent=1 // pred_region
      _
    $region9: #{mlp_gaussian_actor_forward.2} parent=1 // pred_fallthru
      _
    // Predicated region
    $region10: #{mlp_gaussian_actor_forward.2} parent=1 // pred_check
      _
    $region11: #{mlp_gaussian_actor_forward.2} parent=1 // pred_check_branch
      %19 = sbr.rel (0) target = $region13
    $region12: #{mlp_gaussian_actor_forward.2} parent=1 // pred_region
      %s21 = ssub.s32 16, 16
      %22 = vsyncadd [#allocation3], %s21
      %s24 = sshll.u32 [#allocation2], 4
      %s25 = int_to_ptr.vmem [resolvable:$true] %s24
      %27 = dma.hbm_to_vmem [thread:$0]  %s2, 16, %s25, [#allocation3]
    $region13: #{mlp_gaussian_actor_forward.2} parent=1 // pred_fallthru
      _
    // Predicated region
    $region14: #{mlp_gaussian_actor_forward.2} parent=1 // pred_check
      _
    $region15: #{mlp_gaussian_actor_forward.2} parent=1 // pred_check_branch
      %29 = sbr.rel (0) target = $region17
    $region16: #{mlp_gaussian_actor_forward.2} parent=1 // pred_region
      _
    $region17: #{mlp_gaussian_actor_forward.2} parent=1 // pred_fallthru
      _
    // Predicated region
    $region18: #{mlp_gaussian_actor_forward.2} parent=1 // pred_check
      _
    $region19: #{mlp_gaussian_actor_forward.2} parent=1 // pred_check_branch
      %31 = sbr.rel (0) target = $region21
    $region20: #{mlp_gaussian_actor_forward.2} parent=1 // pred_region
      %s33 = ssub.s32 16, 16
      %34 = vsyncadd [#allocation5], %s33
      %s36 = sshll.u32 [#allocation4], 4
      %s37 = int_to_ptr.vmem [resolvable:$true] %s36
      %39 = dma.hbm_to_vmem [thread:$0]  %s4, 16, %s37, [#allocation5]
    $region21: #{mlp_gaussian_actor_forward.2} parent=1 // pred_fallthru
      _
    // Predicated region
    $region22: #{mlp_gaussian_actor_forward.2} parent=1 // pred_check
      _
    $region23: #{mlp_gaussian_actor_forward.2} parent=1 // pred_check_branch
      %41 = sbr.rel (0) target = $region25
    $region24: #{mlp_gaussian_actor_forward.2} parent=1 // pred_region
      _
    $region25: #{mlp_gaussian_actor_forward.2} parent=1 // pred_fallthru
      _
    // Predicated region
    $region26: #{mlp_gaussian_actor_forward.2} parent=1 // pred_check
      _
    $region27: #{mlp_gaussian_actor_forward.2} parent=1 // pred_check_branch
      %43 = sbr.rel (0) target = $region29
    $region28: #{mlp_gaussian_actor_forward.2} parent=1 // pred_region
      %s45 = ssub.s32 16, 16
      %46 = vsyncadd [#allocation5], %s45
      %s48 = sshll.u32 [#allocation6], 4
      %s49 = int_to_ptr.vmem [resolvable:$true] %s48
      %51 = dma.hbm_to_vmem [thread:$0]  %s6, 16, %s49, [#allocation5]
    $region29: #{mlp_gaussian_actor_forward.2} parent=1 // pred_fallthru
      _
    // Predicated region
    $region30: #{mlp_gaussian_actor_forward.2} parent=1 // pred_check
      _
    $region31: #{mlp_gaussian_actor_forward.2} parent=1 // pred_check_branch
      %53 = sbr.rel (0) target = $region33
    $region32: #{mlp_gaussian_actor_forward.2} parent=1 // pred_region
      %54 = dma.done [#allocation3], 16
    $region33: #{mlp_gaussian_actor_forward.2} parent=1 // pred_fallthru
      _
    // Predicated region
    $region34: #{mlp_gaussian_actor_forward.2} parent=1 // pred_check
      _
    $region35: #{mlp_gaussian_actor_forward.2} parent=1 // pred_check_branch
      %56 = sbr.rel (0) target = $region37
    $region36: #{mlp_gaussian_actor_forward.2} parent=1 // pred_region
      %57 = dma.done [#allocation5], 16
    $region37: #{mlp_gaussian_actor_forward.2} parent=1 // pred_fallthru
      _
    // Predicated region
    $region38: #{mlp_gaussian_actor_forward.2} parent=1 // pred_check
      _
    $region39: #{mlp_gaussian_actor_forward.2} parent=1 // pred_check_branch
      %59 = sbr.rel (0) target = $region41
    $region40: #{mlp_gaussian_actor_forward.2} parent=1 // pred_region
      %60 = dma.done [#allocation5], 16
    $region41: #{mlp_gaussian_actor_forward.2} parent=1 // pred_fallthru
      _
    %v61 = vld [vmem:[%s0] sm:$0xff]
    %v62 = vld [vmem:[%s1] sm:$0xff]
    %v63 = vld [vmem:[%s1 + $0x8] sm:$0xff]
    %v64 = vld [vmem:[#allocation2] sm:$0x1]
    %v66 = vlaneseq
    %v67 = vshrl.u32 %v66, 7
    %v68 = vsub.s32 0, %v67
    %v69 = vrot.slane %v64, %v68
    %vm71 = vcmask 130048
    %v73 = vsel %vm71, %v61, 0
    %75 = vmatprep.subr.mxu0 0.0
    %76 = vmatpush1.msra.mxu0 0.0
    %77 = vmatprep.subr.mxu0 0.0
    %78 = vmatpush1.msra.mxu0 0.0
    %79 = vmatprep.subr.mxu0 0.0
    %80 = vmatpush1.msra.mxu0 0.0
    %81 = vmatprep.subr.mxu0 0.0
    %82 = vmatpush1.msra.mxu0 0.0
    %83 = vmatprep.subr.mxu0 0.0
    %84 = vmatpush1.msra.mxu0 0.0
    %85 = vmatprep.subr.mxu0 0.0
    %86 = vmatpush1.msra.mxu0 0.0
    %87 = vmatprep.subr.mxu0 0.0
    %88 = vmatpush1.msra.mxu0 0.0
    %89 = vmatprep.subr.mxu0 0.0
    %90 = vmatpush1.msra.mxu0 0.0
    %91 = vmatprep.subr.mxu0 0.0
    %92 = vmatpush1.msra.mxu0 0.0
    %93 = vmatprep.subr.mxu0 0.0
    %94 = vmatpush1.msra.mxu0 0.0
    %95 = vmatprep.subr.mxu0 0.0
    %96 = vmatpush1.msra.mxu0 0.0
    %97 = vmatprep.subr.mxu0 0.0
    %98 = vmatpush1.msra.mxu0 0.0
    %99 = vmatprep.subr.mxu0 0.0
    %100 = vmatpush1.msra.mxu0 0.0
    %101 = vmatprep.subr.mxu0 0.0
    %102 = vmatpush1.msra.mxu0 0.0
    %103 = vmatprep.subr.mxu0 0.0
    %104 = vmatpush1.msra.mxu0 %v63
    %105 = vmatprep.subr.mxu0 0.0
    %106 = vmatpush1.msra.mxu0 %v62
    %107 = vmatprep.subr.mxu0 0.0
    %108 = vmatpush2.msra.mxu0 0.0
    %109 = vmatprep.subr.mxu0 0.0
    %110 = vmatpush2.msra.mxu0 0.0
    %111 = vmatprep.subr.mxu0 0.0
    %112 = vmatpush2.msra.mxu0 0.0
    %113 = vmatprep.subr.mxu0 0.0
    %114 = vmatpush2.msra.mxu0 0.0
    %115 = vmatprep.subr.mxu0 0.0
    %116 = vmatpush2.msra.mxu0 0.0
    %117 = vmatprep.subr.mxu0 0.0
    %118 = vmatpush2.msra.mxu0 0.0
    %119 = vmatprep.subr.mxu0 0.0
    %120 = vmatpush2.msra.mxu0 0.0
    %121 = vmatprep.subr.mxu0 0.0
    %122 = vmatpush2.msra.mxu0 0.0
    %123 = vmatprep.subr.mxu0 0.0
    %124 = vmatpush2.msra.mxu0 0.0
    %125 = vmatprep.subr.mxu0 0.0
    %126 = vmatpush2.msra.mxu0 0.0
    %127 = vmatprep.subr.mxu0 0.0
    %128 = vmatpush2.msra.mxu0 0.0
    %129 = vmatprep.subr.mxu0 0.0
    %130 = vmatpush2.msra.mxu0 0.0
    %131 = vmatprep.subr.mxu0 0.0
    %132 = vmatpush2.msra.mxu0 0.0
    %133 = vmatprep.subr.mxu0 0.0
    %134 = vmatpush2.msra.mxu0 0.0
    %135 = vmatprep.subr.mxu0 0.0
    %136 = vmatpush2.msra.mxu0 0.0
    %137 = vmatprep.subr.mxu0 0.0
    %138 = vmatpush2.msra.mxu0 0.0
    %139 = vmatprep.mubr.f32.mxu0 0.0
    %140 = vmatmul.mubr.f32.gmra.mxu0 %v73
    %v141 = vpop.f32.mrf.mxu0
    %v142 = vadd.f32 %v69, %v141
    %v143 = vpop.f32.mrf.mxu0
    %144 = vdwg.mxu0
    %v145 = vtanh.pop %v142
    %v146 = vld [vmem:[%s3] sm:$0xff]
    %v147 = vld [vmem:[%s3 + $0x8] sm:$0xff]
    %v148 = vld [vmem:[%s3 + $0x10] sm:$0xff]
    %v149 = vld [vmem:[%s3 + $0x18] sm:$0xff]
    %v150 = vld [vmem:[#allocation4] sm:$0x1]
    %v152 = vlaneseq
    %v153 = vshrl.u32 %v152, 7
    %v154 = vsub.s32 0, %v153
    %v155 = vrot.slane %v150, %v154
    %vm157 = vcmask 261120
    %v159 = vsel %vm157, %v145, 0
    %161 = vmatprep.subr.mxu0 0.0
    %162 = vmatpush1.msra.mxu0 0.0
    %163 = vmatprep.subr.mxu0 0.0
    %164 = vmatpush1.msra.mxu0 0.0
    %165 = vmatprep.subr.mxu0 0.0
    %166 = vmatpush1.msra.mxu0 0.0
    %167 = vmatprep.subr.mxu0 0.0
    %168 = vmatpush1.msra.mxu0 0.0
    %169 = vmatprep.subr.mxu0 0.0
    %170 = vmatpush1.msra.mxu0 0.0
    %171 = vmatprep.subr.mxu0 0.0
    %172 = vmatpush1.msra.mxu0 0.0
    %173 = vmatprep.subr.mxu0 0.0
    %174 = vmatpush1.msra.mxu0 0.0
    %175 = vmatprep.subr.mxu0 0.0
    %176 = vmatpush1.msra.mxu0 0.0
    %177 = vmatprep.subr.mxu0 0.0
    %178 = vmatpush1.msra.mxu0 0.0
    %179 = vmatprep.subr.mxu0 0.0
    %180 = vmatpush1.msra.mxu0 0.0
    %181 = vmatprep.subr.mxu0 0.0
    %182 = vmatpush1.msra.mxu0 0.0
    %183 = vmatprep.subr.mxu0 0.0
    %184 = vmatpush1.msra.mxu0 0.0
    %185 = vmatprep.subr.mxu0 0.0
    %186 = vmatpush1.msra.mxu0 %v149
    %187 = vmatprep.subr.mxu0 0.0
    %188 = vmatpush1.msra.mxu0 %v148
    %189 = vmatprep.subr.mxu0 0.0
    %190 = vmatpush1.msra.mxu0 %v147
    %191 = vmatprep.subr.mxu0 0.0
    %192 = vmatpush1.msra.mxu0 %v146
    %193 = vmatprep.subr.mxu0 0.0
    %194 = vmatpush2.msra.mxu0 0.0
    %195 = vmatprep.subr.mxu0 0.0
    %196 = vmatpush2.msra.mxu0 0.0
    %197 = vmatprep.subr.mxu0 0.0
    %198 = vmatpush2.msra.mxu0 0.0
    %199 = vmatprep.subr.mxu0 0.0
    %200 = vmatpush2.msra.mxu0 0.0
    %201 = vmatprep.subr.mxu0 0.0
    %202 = vmatpush2.msra.mxu0 0.0
    %203 = vmatprep.subr.mxu0 0.0
    %204 = vmatpush2.msra.mxu0 0.0
    %205 = vmatprep.subr.mxu0 0.0
    %206 = vmatpush2.msra.mxu0 0.0
    %207 = vmatprep.subr.mxu0 0.0
    %208 = vmatpush2.msra.mxu0 0.0
    %209 = vmatprep.subr.mxu0 0.0
    %210 = vmatpush2.msra.mxu0 0.0
    %211 = vmatprep.subr.mxu0 0.0
    %212 = vmatpush2.msra.mxu0 0.0
    %213 = vmatprep.subr.mxu0 0.0
    %214 = vmatpush2.msra.mxu0 0.0
    %215 = vmatprep.subr.mxu0 0.0
    %216 = vmatpush2.msra.mxu0 0.0
    %217 = vmatprep.subr.mxu0 0.0
    %218 = vmatpush2.msra.mxu0 0.0
    %219 = vmatprep.subr.mxu0 0.0
    %220 = vmatpush2.msra.mxu0 0.0
    %221 = vmatprep.subr.mxu0 0.0
    %222 = vmatpush2.msra.mxu0 0.0
    %223 = vmatprep.subr.mxu0 0.0
    %224 = vmatpush2.msra.mxu0 0.0
    %225 = vmatprep.mubr.f32.mxu0 0.0
    %226 = vmatmul.mubr.f32.gmra.mxu0 %v159
    %v227 = vpop.f32.mrf.mxu0
    %v228 = vadd.f32 %v155, %v227
    %v229 = vpop.f32.mrf.mxu0
    %230 = vdwg.mxu0
    %v231 = vtanh.pop %v228
    %v232 = vld [vmem:[%s5] sm:$0xff]
    %v233 = vld [vmem:[%s5 + $0x8] sm:$0xff]
    %v234 = vld [vmem:[%s5 + $0x10] sm:$0xff]
    %v235 = vld [vmem:[%s5 + $0x18] sm:$0xff]
    %v236 = vld [vmem:[#allocation6] sm:$0x1]
    %v238 = vlaneseq
    %v239 = vshrl.u32 %v238, 7
    %v240 = vsub.s32 0, %v239
    %v241 = vrot.slane %v236, %v240
    %v244 = vsel %vm157, %v231, 0
    %246 = vmatprep.subr.mxu0 0.0
    %247 = vmatpush1.msra.mxu0 0.0
    %248 = vmatprep.subr.mxu0 0.0
    %249 = vmatpush1.msra.mxu0 0.0
    %250 = vmatprep.subr.mxu0 0.0
    %251 = vmatpush1.msra.mxu0 0.0
    %252 = vmatprep.subr.mxu0 0.0
    %253 = vmatpush1.msra.mxu0 0.0
    %254 = vmatprep.subr.mxu0 0.0
    %255 = vmatpush1.msra.mxu0 0.0
    %256 = vmatprep.subr.mxu0 0.0
    %257 = vmatpush1.msra.mxu0 0.0
    %258 = vmatprep.subr.mxu0 0.0
    %259 = vmatpush1.msra.mxu0 0.0
    %260 = vmatprep.subr.mxu0 0.0
    %261 = vmatpush1.msra.mxu0 0.0
    %262 = vmatprep.subr.mxu0 0.0
    %263 = vmatpush1.msra.mxu0 0.0
    %264 = vmatprep.subr.mxu0 0.0
    %265 = vmatpush1.msra.mxu0 0.0
    %266 = vmatprep.subr.mxu0 0.0
    %267 = vmatpush1.msra.mxu0 0.0
    %268 = vmatprep.subr.mxu0 0.0
    %269 = vmatpush1.msra.mxu0 0.0
    %270 = vmatprep.subr.mxu0 0.0
    %271 = vmatpush1.msra.mxu0 %v235
    %272 = vmatprep.subr.mxu0 0.0
    %273 = vmatpush1.msra.mxu0 %v234
    %274 = vmatprep.subr.mxu0 0.0
    %275 = vmatpush1.msra.mxu0 %v233
    %276 = vmatprep.subr.mxu0 0.0
    %277 = vmatpush1.msra.mxu0 %v232
    %278 = vmatprep.subr.mxu0 0.0
    %279 = vmatpush2.msra.mxu0 0.0
    %280 = vmatprep.subr.mxu0 0.0
    %281 = vmatpush2.msra.mxu0 0.0
    %282 = vmatprep.subr.mxu0 0.0
    %283 = vmatpush2.msra.mxu0 0.0
    %284 = vmatprep.subr.mxu0 0.0
    %285 = vmatpush2.msra.mxu0 0.0
    %286 = vmatprep.subr.mxu0 0.0
    %287 = vmatpush2.msra.mxu0 0.0
    %288 = vmatprep.subr.mxu0 0.0
    %289 = vmatpush2.msra.mxu0 0.0
    %290 = vmatprep.subr.mxu0 0.0
    %291 = vmatpush2.msra.mxu0 0.0
    %292 = vmatprep.subr.mxu0 0.0
    %293 = vmatpush2.msra.mxu0 0.0
    %294 = vmatprep.subr.mxu0 0.0
    %295 = vmatpush2.msra.mxu0 0.0
    %296 = vmatprep.subr.mxu0 0.0
    %297 = vmatpush2.msra.mxu0 0.0
    %298 = vmatprep.subr.mxu0 0.0
    %299 = vmatpush2.msra.mxu0 0.0
    %300 = vmatprep.subr.mxu0 0.0
    %301 = vmatpush2.msra.mxu0 0.0
    %302 = vmatprep.subr.mxu0 0.0
    %303 = vmatpush2.msra.mxu0 0.0
    %304 = vmatprep.subr.mxu0 0.0
    %305 = vmatpush2.msra.mxu0 0.0
    %306 = vmatprep.subr.mxu0 0.0
    %307 = vmatpush2.msra.mxu0 0.0
    %308 = vmatprep.subr.mxu0 0.0
    %309 = vmatpush2.msra.mxu0 0.0
    %310 = vmatprep.mubr.f32.mxu0 0.0
    %311 = vmatmul.mubr.f32.gmra.mxu0 %v244
    %v312 = vpop.f32.mrf.mxu0
    %v313 = vadd.f32 %v241, %v312
    %v314 = vpop.f32.mrf.mxu0
    %315 = vdwg.mxu0
    %vm316 = vcmask 31744
    %317 = vst.msk [vmem:[%s7] sm:$0xff] %vm316, %v313
    // Predicated region
    $region42: #{mlp_gaussian_actor_forward.2} parent=1 // pred_check
      _
    $region43: #{mlp_gaussian_actor_forward.2} parent=1 // pred_check_branch
      %319 = sbr.rel (0) target = $region45
    $region44: #{mlp_gaussian_actor_forward.2} parent=1 // pred_region
      _
    $region45: #{mlp_gaussian_actor_forward.2} parent=1 // pred_fallthru
      _
    // Predicated region
    $region46: #{mlp_gaussian_actor_forward.2} parent=1 // pred_check
      _
    $region47: #{mlp_gaussian_actor_forward.2} parent=1 // pred_check_branch
      %321 = sbr.rel (0) target = $region49
    $region48: #{mlp_gaussian_actor_forward.2} parent=1 // pred_region
      _
    $region49: #{mlp_gaussian_actor_forward.2} parent=1 // pred_fallthru
      _
    %322 = vsyncpa [#allocation3], 1
    %323 = vsyncpa [#allocation5], 1

// kernel: mlp_gaussian_actor_forward.3
$region0: #{mlp_gaussian_actor_forward.3}
  #allocation0 [shape = 'u32[]', space=smem, size = 0x4, offset = 0x4, fixed_abs, tag = 'smem constant byte address 0x4 - core index']
  #allocation1 [shape = 'u32[144,128]{1,0:T(1,128)}', space=vmem, size = 0x12000, scoped, tag = 'internal scratch']
  %s0 = inlined_call_operand.vmem [shape: f32[1,32], index: 0, kind: input, shape index: {}]
  %s1 = inlined_call_operand.vmem [shape: f32[1,32], index: 1, kind: input, shape index: {}]
  %s2 = inlined_call_operand.vmem [shape: f32[1,32], index: 2, kind: input, shape index: {}]
  %s3 = inlined_call_operand.vmem [shape: f32[1,32], index: 3, kind: input, shape index: {}]
  %s4 = inlined_call_operand.vmem [shape: f32[2,32], index: 4, kind: input, shape index: {}]
  %s5 = inlined_call_operand.vmem [shape: f32[2,32], index: 5, kind: output, shape index: {}]
  %s6 = sld [smem:[#allocation0]]
  $region30: #{mlp_gaussian_actor_forward.3} parent=0
    _
  %s8 = ssub.s32 1, %s6
  %s9 = scalar_select 0, %s8, %s6
  // Predicated region
  $region2: #{mlp_gaussian_actor_forward.3} parent=0 // pred_check
    _
  $region3: #{mlp_gaussian_actor_forward.3} parent=0 // pred_check_branch
    %11 = sbr.rel (0) target = $region5
  $region4: #{mlp_gaussian_actor_forward.3} parent=0 // pred_region
    _
  $region5: #{mlp_gaussian_actor_forward.3} parent=0 // pred_fallthru
    _
  // Predicated region
  $region6: #{mlp_gaussian_actor_forward.3} parent=0 // pred_check
    _
  $region7: #{mlp_gaussian_actor_forward.3} parent=0 // pred_check_branch
    %13 = sbr.rel (0) target = $region9
  $region8: #{mlp_gaussian_actor_forward.3} parent=0 // pred_region
    _
  $region9: #{mlp_gaussian_actor_forward.3} parent=0 // pred_fallthru
    _
  // Predicated region
  $region10: #{mlp_gaussian_actor_forward.3} parent=0 // pred_check
    _
  $region11: #{mlp_gaussian_actor_forward.3} parent=0 // pred_check_branch
    %15 = sbr.rel (0) target = $region13
  $region12: #{mlp_gaussian_actor_forward.3} parent=0 // pred_region
    _
  $region13: #{mlp_gaussian_actor_forward.3} parent=0 // pred_fallthru
    _
  // Predicated region
  $region14: #{mlp_gaussian_actor_forward.3} parent=0 // pred_check
    _
  $region15: #{mlp_gaussian_actor_forward.3} parent=0 // pred_check_branch
    %17 = sbr.rel (0) target = $region17
  $region16: #{mlp_gaussian_actor_forward.3} parent=0 // pred_region
    _
  $region17: #{mlp_gaussian_actor_forward.3} parent=0 // pred_fallthru
    _
  // Predicated region
  $region18: #{mlp_gaussian_actor_forward.3} parent=0 // pred_check
    _
  $region19: #{mlp_gaussian_actor_forward.3} parent=0 // pred_check_branch
    %19 = sbr.rel (0) target = $region21
  $region20: #{mlp_gaussian_actor_forward.3} parent=0 // pred_region
    _
  $region21: #{mlp_gaussian_actor_forward.3} parent=0 // pred_fallthru
    _
  %v20 = vld [vmem:[%s0] sm:$0x1]
  %v21 = vld [vmem:[%s1] sm:$0x1]
  %v22 = vld [vmem:[%s4] sm:$0x3]
  %v24 = vlaneseq
  %v25 = vshrl.u32 %v24, 7
  %v26 = vsub.s32 0, %v25
  %v27 = vrot.slane %v21, %v26
  %v29 = vmul.f32 %v27, %v22
  %v31 = vlaneseq
  %v32 = vshrl.u32 %v31, 7
  %v33 = vsub.s32 0, %v32
  %v34 = vrot.slane %v20, %v33
  %v36 = vadd.f32 %v34, %v29
  %v37 = vld [vmem:[%s2] sm:$0x1]
  %v38 = vld [vmem:[%s3] sm:$0x1]
  %v39 = vtanh.pop %v36
  %v41 = vlaneseq
  %v42 = vshrl.u32 %v41, 7
  %v43 = vsub.s32 0, %v42
  %v44 = vrot.slane %v38, %v43
  %v46 = vmul.f32 %v44, %v39
  %v48 = vlaneseq
  %v49 = vshrl.u32 %v48, 7
  %v50 = vsub.s32 0, %v49
  %v51 = vrot.slane %v37, %v50
  %v53 = vadd.f32 %v51, %v46
  %vm54 = vcmask 254976
  %55 = vst.msk [vmem:[%s5] sm:$0x3] %vm54, %v53
  // Predicated region
  $region22: #{mlp_gaussian_actor_forward.3} parent=0 // pred_check
    _
  $region23: #{mlp_gaussian_actor_forward.3} parent=0 // pred_check_branch
    %57 = sbr.rel (0) target = $region25
  $region24: #{mlp_gaussian_actor_forward.3} parent=0 // pred_region
    _
  $region25: #{mlp_gaussian_actor_forward.3} parent=0 // pred_fallthru
    _
  // Predicated region
  $region26: #{mlp_gaussian_actor_forward.3} parent=0 // pred_check
    _
  $region27: #{mlp_gaussian_actor_forward.3} parent=0 // pred_check_branch
    %59 = sbr.rel (0) target = $region29
  $region28: #{mlp_gaussian_actor_forward.3} parent=0 // pred_region
    _
  $region29: #{mlp_gaussian_actor_forward.3} parent=0 // pred_fallthru
    _

</llo_original>
